<compile_context>
chip_gen: v7x
topology: tpu7x:2x2x1
jax: 0.10.0
libtpu: 0.0.40
codegen_flags: <defaults>
</compile_context>

<pallas_src>
import functools

import jax
import jax.numpy as jnp
from jax import lax
from jax.experimental import pallas as pl
from jax.experimental.pallas import tpu as pltpu

_EPS = 1e-5


def _round_up(v, m):
    return ((v + m - 1) // m) * m


def _inverted_residual_kernel(x_ref, mask_ref, w1_ref, b1_ref, dw_ref, b2_ref,
                              w3_ref, b3_ref, o_ref, *,
                              H, W, cout, use_res_connect):
    """One (batch image, hidden-channel block) grid step.

    In-kernel shapes (channels on sublanes, flat H*W spatial on lanes):
      x_ref   : (1, Cin, S)  f32     mask_ref: (9, S)      f32
      w1_ref  : (TH, Cin)    bf16    b1_ref  : (TH, 1)     f32
      dw_ref  : (TH, 9)      f32     b2_ref  : (TH, 1)     f32
      w3_ref  : (Cout, TH)   bf16    b3_ref  : (Cout, 1)   f32
      o_ref   : (1, Cout, S) f32     (accumulated across hidden blocks)
    """
    hb = pl.program_id(1)
    S = H * W

    x = x_ref[0]                                              # (Cin, S) f32

    # ---- 1x1 expand conv (bf16 MXU, f32 accumulate) + folded BN + ReLU6 ----
    h = jnp.dot(w1_ref[...], x.astype(w1_ref.dtype),
                preferred_element_type=jnp.float32)           # (TH, S)
    h = jnp.clip(h + b1_ref[...], 0.0, 6.0)

    # ---- 3x3 depthwise conv (stride 1, pad 1): XLU lane rolls + edge masks --
    dwk = dw_ref[...]                                         # (TH, 9)
    acc = h * dwk[:, 4:5]                                     # centre tap (1,1)
    for ti in range(3):
        for tj in range(3):
            t = ti * 3 + tj
            if t == 4:
                continue
            off = (ti - 1) * W + (tj - 1)                     # flat-index offset
            tap = pltpu.roll(h, shift=(-off) % S, axis=1)     # tap[p] == h[p+off]
            acc = acc + (tap * mask_ref[t:t + 1, :]) * dwk[:, t:t + 1]
    acc = jnp.clip(acc + b2_ref[...], 0.0, 6.0)

    # ---- 1x1 project conv: partial sums accumulated over hidden blocks -----
    @pl.when(hb == 0)
    def _init():
        init = jnp.broadcast_to(b3_ref[...], (cout, S))
        if use_res_connect:                                   # stride==1, Cin==Cout
            init = init + x[:cout, :]
        o_ref[0] = init.astype(o_ref.dtype)

    o_ref[0] += jnp.dot(w3_ref[...], acc.astype(w3_ref.dtype),
                        preferred_element_type=jnp.float32).astype(o_ref.dtype)


def _edge_masks(H, W):
    """(9, H*W) f32: 1.0 where the 3x3 tap (row-major) stays inside the image."""
    r = jnp.arange(H, dtype=jnp.int32)[:, None]
    c = jnp.arange(W, dtype=jnp.int32)[None, :]
    ms = []
    for ti in range(3):
        for tj in range(3):
            dr, dc = ti - 1, tj - 1
            ok = (r + dr >= 0) & (r + dr < H) & (c + dc >= 0) & (c + dc < W)
            ms.append(ok.reshape(-1))
    return jnp.stack(ms).astype(jnp.float32)


def inverted_residual_pallas(x_nchw, folded, *, stride, use_res_connect):
    """x_nchw: (N, Cin, H, W) f32. Returns (N, Cout, Ho, Wo) f32 (PyTorch layout)."""
    assert stride in (1, 2)
    w1, b1, dwk, b2, w3, b3 = folded
    N, Cin, H, W = x_nchw.shape
    hidden_p = w1.shape[0]
    Cout = w3.shape[0]
    S = H * W
    if use_res_connect:
        assert stride == 1 and Cin == Cout

    # NCHW -> (N, C, H*W): contiguous-dim merge == free reshape (no transpose).
    x = x_nchw.reshape(N, Cin, S)
    masks = _edge_masks(H, W)

    tile_hid = hidden_p if hidden_p <= 256 else 128
    num_hb = hidden_p // tile_hid

    kernel = functools.partial(_inverted_residual_kernel, H=H, W=W, cout=Cout,
                               use_res_connect=use_res_connect)

    # Advisory cost + VMEM budget sized to the chosen tile (v7x-safe 64 MiB cap).
    flops = int(N * S * hidden_p * (2 * Cin + 2 * Cout + 20))
    bytes_accessed = int(4 * N * S * (Cin + Cout) + 4 * 9 * S
                         + 2 * (w1.size + w3.size)
                         + 4 * (b1.size + b2.size + b3.size + dwk.size))
    vmem_est = 4 * S * (2 * Cin + 2 * Cout + 9 + 5 * tile_hid) + (1 << 20)
    vmem_limit = int(min(64 * 2 ** 20, max(16 * 2 ** 20, 2 * vmem_est)))

    out_flat = pl.pallas_call(
        kernel,
        out_shape=jax.ShapeDtypeStruct((N, Cout, S), jnp.float32),
        grid_spec=pltpu.PrefetchScalarGridSpec(
            num_scalar_prefetch=0,
            grid=(N, num_hb),                 # hidden blocks innermost (reduction)
            in_specs=[
                pl.BlockSpec((1, Cin, S), lambda n, k: (n, 0, 0)),
                pl.BlockSpec((9, S), lambda n, k: (0, 0)),
                pl.BlockSpec((tile_hid, Cin), lambda n, k: (k, 0)),
                pl.BlockSpec((tile_hid, 1), lambda n, k: (k, 0)),
                pl.BlockSpec((tile_hid, 9), lambda n, k: (k, 0)),
                pl.BlockSpec((tile_hid, 1), lambda n, k: (k, 0)),
                pl.BlockSpec((Cout, tile_hid), lambda n, k: (0, k)),
                pl.BlockSpec((Cout, 1), lambda n, k: (0, 0)),
            ],
            out_specs=pl.BlockSpec((1, Cout, S), lambda n, k: (n, 0, 0)),
        ),
        compiler_params=pltpu.CompilerParams(
            dimension_semantics=("parallel", "arbitrary"),
            vmem_limit_bytes=vmem_limit,
        ),
        cost_estimate=pl.CostEstimate(flops=flops, transcendentals=0,
                                      bytes_accessed=bytes_accessed),
    )(x, masks, w1, b1, dwk, b2, w3, b3)

    out = out_flat.reshape(N, Cout, H, W)
    if stride == 2:
        # stride-2 depthwise (k=3, pad=1) == stride-1 output at even rows/cols,
        # and the 1x1 project is pointwise, so sampling commutes.  Handles odd
        # H/W correctly: Ho = ceil(H/2) = floor((H-1)/2)+1.
        out = out[:, :, ::2, ::2]
    return out


# ---------------- parameter construction & BN folding (glue) ----------------

def make_params(key, inp, oup, expand_ratio):
    hidden = inp * expand_ratio
    ks = jax.random.split(key, 15)

    def bn(k0, k1, k2, k3, c):
        gamma = 1.0 + 0.1 * jax.random.normal(k0, (c,), jnp.float32)
        beta = 0.1 * jax.random.normal(k1, (c,), jnp.float32)
        mean = 0.1 * jax.random.normal(k2, (c,), jnp.float32)
        var = 0.9 + 0.1 * jnp.abs(jax.random.normal(k3, (c,), jnp.float32))
        return gamma, beta, mean, var

    w1 = 0.2 * jax.random.normal(ks[0], (hidden, inp, 1, 1), jnp.float32)      # OIHW
    bn1 = bn(ks[1], ks[2], ks[3], ks[4], hidden)
    wd = 0.2 * jax.random.normal(ks[5], (hidden, 1, 3, 3), jnp.float32)        # depthwise OIHW
    bn2 = bn(ks[6], ks[7], ks[8], ks[9], hidden)
    w3 = 0.2 * jax.random.normal(ks[10], (oup, hidden, 1, 1), jnp.float32)
    bn3 = bn(ks[11], ks[12], ks[13], ks[14], oup)
    return dict(w1=w1, bn1=bn1, wd=wd, bn2=bn2, w3=w3, bn3=bn3)


def fold_params(p, matmul_dtype=jnp.bfloat16):
    """Fold eval-mode BatchNorm into the convs and lay weights out channels-major.

    Returns (w1, b1, dw, b2, w3, b3):
      w1: (hidden_p, Cin)  matmul_dtype     b1: (hidden_p, 1) f32
      dw: (hidden_p, 9)    f32              b2: (hidden_p, 1) f32
      w3: (Cout, hidden_p) matmul_dtype     b3: (Cout, 1)     f32
    hidden_p pads the expanded channel count to a multiple of 8 (sublane tile),
    or of 128 when >256 so it splits into 128-channel grid blocks.  Padded
    channels are exact zeros end-to-end, so they never affect the output.
    """
    g1, be1, m1, v1 = p["bn1"]
    g2, be2, m2, v2 = p["bn2"]
    g3, be3, m3, v3 = p["bn3"]
    s1 = g1 / jnp.sqrt(v1 + _EPS)
    s2 = g2 / jnp.sqrt(v2 + _EPS)
    s3 = g3 / jnp.sqrt(v3 + _EPS)

    hidden = p["w1"].shape[0]
    hidden_p = _round_up(hidden, 8) if hidden <= 256 else _round_up(hidden, 128)
    pad_h = hidden_p - hidden

    w1 = p["w1"][:, :, 0, 0] * s1[:, None]                      # (hidden, Cin)
    w1 = jnp.pad(w1, ((0, pad_h), (0, 0))).astype(matmul_dtype)
    b1 = jnp.pad(be1 - m1 * s1, (0, pad_h))[:, None].astype(jnp.float32)

    dw = (p["wd"][:, 0, :, :] * s2[:, None, None]).reshape(hidden, 9)
    dw = jnp.pad(dw, ((0, pad_h), (0, 0))).astype(jnp.float32)  # (hidden_p, 9)
    b2 = jnp.pad(be2 - m2 * s2, (0, pad_h))[:, None].astype(jnp.float32)

    w3 = p["w3"][:, :, 0, 0] * s3[:, None]                      # (Cout, hidden)
    w3 = jnp.pad(w3, ((0, 0), (0, pad_h))).astype(matmul_dtype)
    b3 = (be3 - m3 * s3)[:, None].astype(jnp.float32)
    return (w1, b1, dw, b2, w3, b3)


# ---------------------- plain-JAX reference (for check) ---------------------

def reference_forward(x, p, stride, use_res_connect):
    dn = ("NCHW", "OIHW", "NCHW")

    def bn_apply(y, bnp):
        g, b, m, v = bnp
        g, b, m, v = (t[None, :, None, None] for t in (g, b, m, v))
        return (y - m) / jnp.sqrt(v + _EPS) * g + b

    y = lax.conv_general_dilated(x, p["w1"], (1, 1), ((0, 0), (0, 0)),
                                 dimension_numbers=dn)
    y = jnp.clip(bn_apply(y, p["bn1"]), 0.0, 6.0)
    y = lax.conv_general_dilated(y, p["wd"], (stride, stride), ((1, 1), (1, 1)),
                                 dimension_numbers=dn,
                                 feature_group_count=p["wd"].shape[0])
    y = jnp.clip(bn_apply(y, p["bn2"]), 0.0, 6.0)
    y = lax.conv_general_dilated(y, p["w3"], (1, 1), ((0, 0), (0, 0)),
                                 dimension_numbers=dn)
    y = bn_apply(y, p["bn3"])
    return x + y if use_res_connect else y


if __name__ == "__main__":
    key = jax.random.PRNGKey(0)
    k1x, k1p, k2x, k2p = jax.random.split(key, 4)

    # Case 1: stride 1, inp == oup -> residual path (original test shape).
    N, inp, oup, H, W, stride, expand = 2, 4, 4, 16, 16, 1, 4
    use_res = (stride == 1 and inp == oup)
    x = jax.random.normal(k1x, (N, inp, H, W), jnp.float32)
    params = make_params(k1p, inp, oup, expand)
    out = inverted_residual_pallas(x, fold_params(params), stride=stride,
                                   use_res_connect=use_res)
    out = jax.block_until_ready(out)
    ref = reference_forward(x, params, stride, use_res)
    assert out.shape == ref.shape, (out.shape, ref.shape)
    # bf16 MXU inputs (f32 accumulation) -> bf16-appropriate tolerance vs the
    # f32 reference.
    assert jnp.allclose(out, ref, atol=2e-2, rtol=2e-2), \
        float(jnp.max(jnp.abs(out - ref)))

    # Case 2: stride 2, no residual (exercises the strided output path).
    N2, inp2, oup2, H2, W2, stride2, expand2 = 2, 4, 8, 16, 16, 2, 4
    x2 = jax.random.normal(k2x, (N2, inp2, H2, W2), jnp.float32)
    params2 = make_params(k2p, inp2, oup2, expand2)
    out2 = inverted_residual_pallas(x2, fold_params(params2), stride=stride2,
                                    use_res_connect=False)
    out2 = jax.block_until_ready(out2)
    ref2 = reference_forward(x2, params2, stride2, False)
    assert out2.shape == ref2.shape, (out2.shape, ref2.shape)
    assert jnp.allclose(out2, ref2, atol=2e-2, rtol=2e-2), \
        float(jnp.max(jnp.abs(out2 - ref2)))

    print("KERNEL_OK")
</pallas_src>

<mosaic_0001>
module attributes {stable_mosaic.version = 11 : i64} {
  func.func @_inverted_residual_kernel(%arg0: i32, %arg1: i32, %arg2: memref<1x4x256xf32, #tpu.memory_space<vmem>>, %arg3: memref<9x256xf32, #tpu.memory_space<vmem>>, %arg4: memref<16x4xbf16, #tpu.memory_space<vmem>>, %arg5: memref<16x1xf32, #tpu.memory_space<vmem>>, %arg6: memref<16x9xf32, #tpu.memory_space<vmem>>, %arg7: memref<16x1xf32, #tpu.memory_space<vmem>>, %arg8: memref<4x16xbf16, #tpu.memory_space<vmem>>, %arg9: memref<4x1xf32, #tpu.memory_space<vmem>>, %arg10: memref<1x4x256xf32, #tpu.memory_space<vmem>>) attributes {dimension_semantics = [#tpu.dimension_semantics<parallel>, #tpu.dimension_semantics<arbitrary>], iteration_bounds = array<i64: 2, 1>, scalar_prefetch = 0 : i64, scratch_operands = 0 : i64, tpu.core_type = #tpu.core_type<tc>, window_params = [{transform_indices = @transform_0, window_bounds = array<i64: 1, 4, 256>}, {pipeline_mode = #tpu.pipeline_mode<synchronous>, transform_indices = @transform_1, window_bounds = array<i64: 9, 256>}, {transform_indices = @transform_2, window_bounds = array<i64: 16, 4>}, {transform_indices = @transform_3, window_bounds = array<i64: 16, 1>}, {transform_indices = @transform_4, window_bounds = array<i64: 16, 9>}, {transform_indices = @transform_5, window_bounds = array<i64: 16, 1>}, {transform_indices = @transform_6, window_bounds = array<i64: 4, 16>}, {pipeline_mode = #tpu.pipeline_mode<synchronous>, transform_indices = @transform_7, window_bounds = array<i64: 4, 1>}, {transform_indices = @transform_8, window_bounds = array<i64: 1, 4, 256>}]} {
    %c0 = arith.constant 0 : index
    %c0_0 = arith.constant 0 : index
    %c0_1 = arith.constant 0 : index
    %0 = vector.load %arg2[%c0, %c0_0, %c0_1] : memref<1x4x256xf32, #tpu.memory_space<vmem>>, vector<1x4x256xf32>
    %1 = vector.shape_cast %0 : vector<1x4x256xf32> to vector<4x256xf32>
    %c0_2 = arith.constant 0 : index
    %c0_3 = arith.constant 0 : index
    %2 = vector.load %arg4[%c0_2, %c0_3] : memref<16x4xbf16, #tpu.memory_space<vmem>>, vector<16x4xbf16>
    %3 = arith.truncf %1 : vector<4x256xf32> to vector<4x256xbf16>
    %cst = arith.constant dense<0.000000e+00> : vector<16x256xf32>
    %4 = tpu.matmul %2, %3, %cst {dimension_numbers = #tpu.dot_dimension_numbers<[1], [0], [0], [1], [0, 0, 1, 1], [], []>} : vector<16x4xbf16>, vector<4x256xbf16>, vector<16x256xf32> -> vector<16x256xf32>
    %c0_4 = arith.constant 0 : index
    %c0_5 = arith.constant 0 : index
    %5 = vector.load %arg5[%c0_4, %c0_5] : memref<16x1xf32, #tpu.memory_space<vmem>>, vector<16x1xf32>
    %6 = vector.broadcast %5 : vector<16x1xf32> to vector<16x256xf32>
    %7 = arith.addf %4, %6 : vector<16x256xf32>
    %cst_6 = arith.constant 0.000000e+00 : f32
    %cst_7 = arith.constant 6.000000e+00 : f32
    %8 = vector.broadcast %cst_6 : f32 to vector<16x256xf32>
    %9 = arith.maximumf %8, %7 : vector<16x256xf32>
    %10 = vector.broadcast %cst_7 : f32 to vector<16x256xf32>
    %11 = arith.minimumf %10, %9 : vector<16x256xf32>
    %c0_8 = arith.constant 0 : index
    %c0_9 = arith.constant 0 : index
    %12 = vector.load %arg6[%c0_8, %c0_9] : memref<16x9xf32, #tpu.memory_space<vmem>>, vector<16x9xf32>
    %13 = vector.extract_strided_slice %12 {offsets = [0, 4], sizes = [16, 1], strides = [1, 1]} : vector<16x9xf32> to vector<16x1xf32>
    %14 = vector.broadcast %13 : vector<16x1xf32> to vector<16x256xf32>
    %15 = arith.mulf %11, %14 : vector<16x256xf32>
    %c17_i32 = arith.constant 17 : i32
    %16 = tpu.dynamic_rotate %11 by %c17_i32 dim 1 : vector<16x256xf32>, i32 -> vector<16x256xf32>
    %c0_10 = arith.constant 0 : index
    %c0_11 = arith.constant 0 : index
    %17 = vector.load %arg3[%c0_10, %c0_11] : memref<9x256xf32, #tpu.memory_space<vmem>>, vector<1x256xf32>
    %18 = vector.broadcast %17 : vector<1x256xf32> to vector<16x256xf32>
    %19 = arith.mulf %16, %18 : vector<16x256xf32>
    %20 = vector.extract_strided_slice %12 {offsets = [0, 0], sizes = [16, 1], strides = [1, 1]} : vector<16x9xf32> to vector<16x1xf32>
    %21 = vector.broadcast %20 : vector<16x1xf32> to vector<16x256xf32>
    %22 = arith.mulf %19, %21 : vector<16x256xf32>
    %23 = arith.addf %15, %22 : vector<16x256xf32>
    %c16_i32 = arith.constant 16 : i32
    %24 = tpu.dynamic_rotate %11 by %c16_i32 dim 1 : vector<16x256xf32>, i32 -> vector<16x256xf32>
    %c1 = arith.constant 1 : index
    %c0_12 = arith.constant 0 : index
    %25 = vector.load %arg3[%c1, %c0_12] : memref<9x256xf32, #tpu.memory_space<vmem>>, vector<1x256xf32>
    %26 = vector.broadcast %25 : vector<1x256xf32> to vector<16x256xf32>
    %27 = arith.mulf %24, %26 : vector<16x256xf32>
    %28 = vector.extract_strided_slice %12 {offsets = [0, 1], sizes = [16, 1], strides = [1, 1]} : vector<16x9xf32> to vector<16x1xf32>
    %29 = vector.broadcast %28 : vector<16x1xf32> to vector<16x256xf32>
    %30 = arith.mulf %27, %29 : vector<16x256xf32>
    %31 = arith.addf %23, %30 : vector<16x256xf32>
    %c15_i32 = arith.constant 15 : i32
    %32 = tpu.dynamic_rotate %11 by %c15_i32 dim 1 : vector<16x256xf32>, i32 -> vector<16x256xf32>
    %c2 = arith.constant 2 : index
    %c0_13 = arith.constant 0 : index
    %33 = vector.load %arg3[%c2, %c0_13] : memref<9x256xf32, #tpu.memory_space<vmem>>, vector<1x256xf32>
    %34 = vector.broadcast %33 : vector<1x256xf32> to vector<16x256xf32>
    %35 = arith.mulf %32, %34 : vector<16x256xf32>
    %36 = vector.extract_strided_slice %12 {offsets = [0, 2], sizes = [16, 1], strides = [1, 1]} : vector<16x9xf32> to vector<16x1xf32>
    %37 = vector.broadcast %36 : vector<16x1xf32> to vector<16x256xf32>
    %38 = arith.mulf %35, %37 : vector<16x256xf32>
    %39 = arith.addf %31, %38 : vector<16x256xf32>
    %c1_i32 = arith.constant 1 : i32
    %40 = tpu.dynamic_rotate %11 by %c1_i32 dim 1 : vector<16x256xf32>, i32 -> vector<16x256xf32>
    %c3 = arith.constant 3 : index
    %c0_14 = arith.constant 0 : index
    %41 = vector.load %arg3[%c3, %c0_14] : memref<9x256xf32, #tpu.memory_space<vmem>>, vector<1x256xf32>
    %42 = vector.broadcast %41 : vector<1x256xf32> to vector<16x256xf32>
    %43 = arith.mulf %40, %42 : vector<16x256xf32>
    %44 = vector.extract_strided_slice %12 {offsets = [0, 3], sizes = [16, 1], strides = [1, 1]} : vector<16x9xf32> to vector<16x1xf32>
    %45 = vector.broadcast %44 : vector<16x1xf32> to vector<16x256xf32>
    %46 = arith.mulf %43, %45 : vector<16x256xf32>
    %47 = arith.addf %39, %46 : vector<16x256xf32>
    %c255_i32 = arith.constant 255 : i32
    %48 = tpu.dynamic_rotate %11 by %c255_i32 dim 1 : vector<16x256xf32>, i32 -> vector<16x256xf32>
    %c5 = arith.constant 5 : index
    %c0_15 = arith.constant 0 : index
    %49 = vector.load %arg3[%c5, %c0_15] : memref<9x256xf32, #tpu.memory_space<vmem>>, vector<1x256xf32>
    %50 = vector.broadcast %49 : vector<1x256xf32> to vector<16x256xf32>
    %51 = arith.mulf %48, %50 : vector<16x256xf32>
    %52 = vector.extract_strided_slice %12 {offsets = [0, 5], sizes = [16, 1], strides = [1, 1]} : vector<16x9xf32> to vector<16x1xf32>
    %53 = vector.broadcast %52 : vector<16x1xf32> to vector<16x256xf32>
    %54 = arith.mulf %51, %53 : vector<16x256xf32>
    %55 = arith.addf %47, %54 : vector<16x256xf32>
    %c241_i32 = arith.constant 241 : i32
    %56 = tpu.dynamic_rotate %11 by %c241_i32 dim 1 : vector<16x256xf32>, i32 -> vector<16x256xf32>
    %c6 = arith.constant 6 : index
    %c0_16 = arith.constant 0 : index
    %57 = vector.load %arg3[%c6, %c0_16] : memref<9x256xf32, #tpu.memory_space<vmem>>, vector<1x256xf32>
    %58 = vector.broadcast %57 : vector<1x256xf32> to vector<16x256xf32>
    %59 = arith.mulf %56, %58 : vector<16x256xf32>
    %60 = vector.extract_strided_slice %12 {offsets = [0, 6], sizes = [16, 1], strides = [1, 1]} : vector<16x9xf32> to vector<16x1xf32>
    %61 = vector.broadcast %60 : vector<16x1xf32> to vector<16x256xf32>
    %62 = arith.mulf %59, %61 : vector<16x256xf32>
    %63 = arith.addf %55, %62 : vector<16x256xf32>
    %c240_i32 = arith.constant 240 : i32
    %64 = tpu.dynamic_rotate %11 by %c240_i32 dim 1 : vector<16x256xf32>, i32 -> vector<16x256xf32>
    %c7 = arith.constant 7 : index
    %c0_17 = arith.constant 0 : index
    %65 = vector.load %arg3[%c7, %c0_17] : memref<9x256xf32, #tpu.memory_space<vmem>>, vector<1x256xf32>
    %66 = vector.broadcast %65 : vector<1x256xf32> to vector<16x256xf32>
    %67 = arith.mulf %64, %66 : vector<16x256xf32>
    %68 = vector.extract_strided_slice %12 {offsets = [0, 7], sizes = [16, 1], strides = [1, 1]} : vector<16x9xf32> to vector<16x1xf32>
    %69 = vector.broadcast %68 : vector<16x1xf32> to vector<16x256xf32>
    %70 = arith.mulf %67, %69 : vector<16x256xf32>
    %71 = arith.addf %63, %70 : vector<16x256xf32>
    %c239_i32 = arith.constant 239 : i32
    %72 = tpu.dynamic_rotate %11 by %c239_i32 dim 1 : vector<16x256xf32>, i32 -> vector<16x256xf32>
    %c8 = arith.constant 8 : index
    %c0_18 = arith.constant 0 : index
    %73 = vector.load %arg3[%c8, %c0_18] : memref<9x256xf32, #tpu.memory_space<vmem>>, vector<1x256xf32>
    %74 = vector.broadcast %73 : vector<1x256xf32> to vector<16x256xf32>
    %75 = arith.mulf %72, %74 : vector<16x256xf32>
    %76 = vector.extract_strided_slice %12 {offsets = [0, 8], sizes = [16, 1], strides = [1, 1]} : vector<16x9xf32> to vector<16x1xf32>
    %77 = vector.broadcast %76 : vector<16x1xf32> to vector<16x256xf32>
    %78 = arith.mulf %75, %77 : vector<16x256xf32>
    %79 = arith.addf %71, %78 : vector<16x256xf32>
    %c0_19 = arith.constant 0 : index
    %c0_20 = arith.constant 0 : index
    %80 = vector.load %arg7[%c0_19, %c0_20] : memref<16x1xf32, #tpu.memory_space<vmem>>, vector<16x1xf32>
    %81 = vector.broadcast %80 : vector<16x1xf32> to vector<16x256xf32>
    %82 = arith.addf %79, %81 : vector<16x256xf32>
    %cst_21 = arith.constant 0.000000e+00 : f32
    %cst_22 = arith.constant 6.000000e+00 : f32
    %83 = vector.broadcast %cst_21 : f32 to vector<16x256xf32>
    %84 = arith.maximumf %83, %82 : vector<16x256xf32>
    %85 = vector.broadcast %cst_22 : f32 to vector<16x256xf32>
    %86 = arith.minimumf %85, %84 : vector<16x256xf32>
    %c0_i32 = arith.constant 0 : i32
    %87 = arith.cmpi eq, %arg1, %c0_i32 : i32
    %88 = arith.extui %87 : i1 to i32
    %c0_i32_23 = arith.constant 0 : i32
    %89 = arith.cmpi ne, %88, %c0_i32_23 : i32
    scf.if %89 {
      %c0_33 = arith.constant 0 : index
      %c0_34 = arith.constant 0 : index
      %99 = vector.load %arg9[%c0_33, %c0_34] : memref<4x1xf32, #tpu.memory_space<vmem>>, vector<4x1xf32>
      %100 = vector.shape_cast %99 : vector<4x1xf32> to vector<4x1xf32>
      %101 = vector.broadcast %100 : vector<4x1xf32> to vector<4x256xf32>
      %102 = arith.addf %101, %1 : vector<4x256xf32>
      %c0_35 = arith.constant 0 : index
      %c0_36 = arith.constant 0 : index
      %c0_37 = arith.constant 0 : index
      %103 = vector.load %arg10[%c0_35, %c0_36, %c0_37] : memref<1x4x256xf32, #tpu.memory_space<vmem>>, vector<1x4x256xf32>
      %104 = vector.shape_cast %103 : vector<1x4x256xf32> to vector<4x256xf32>
      %105 = vector.shape_cast %102 : vector<4x256xf32> to vector<1x4x256xf32>
      tpu.vector_store %arg10[%c0_35, %c0_36, %c0_37], %105 {strides = array<i32>} : memref<1x4x256xf32, #tpu.memory_space<vmem>>, vector<1x4x256xf32>,
    } else {
    }
    %c0_24 = arith.constant 0 : index
    %c0_25 = arith.constant 0 : index
    %c0_26 = arith.constant 0 : index
    %90 = vector.load %arg10[%c0_24, %c0_25, %c0_26] : memref<1x4x256xf32, #tpu.memory_space<vmem>>, vector<1x4x256xf32>
    %91 = vector.shape_cast %90 : vector<1x4x256xf32> to vector<4x256xf32>
    %c0_27 = arith.constant 0 : index
    %c0_28 = arith.constant 0 : index
    %92 = vector.load %arg8[%c0_27, %c0_28] : memref<4x16xbf16, #tpu.memory_space<vmem>>, vector<4x16xbf16>
    %93 = arith.truncf %86 : vector<16x256xf32> to vector<16x256xbf16>
    %cst_29 = arith.constant dense<0.000000e+00> : vector<4x256xf32>
    %94 = tpu.matmul %92, %93, %cst_29 {dimension_numbers = #tpu.dot_dimension_numbers<[1], [0], [0], [1], [0, 0, 1, 1], [], []>} : vector<4x16xbf16>, vector<16x256xbf16>, vector<4x256xf32> -> vector<4x256xf32>
    %95 = arith.addf %91, %94 : vector<4x256xf32>
    %c0_30 = arith.constant 0 : index
    %c0_31 = arith.constant 0 : index
    %c0_32 = arith.constant 0 : index
    %96 = vector.load %arg10[%c0_30, %c0_31, %c0_32] : memref<1x4x256xf32, #tpu.memory_space<vmem>>, vector<1x4x256xf32>
    %97 = vector.shape_cast %96 : vector<1x4x256xf32> to vector<4x256xf32>
    %98 = vector.shape_cast %95 : vector<4x256xf32> to vector<1x4x256xf32>
    tpu.vector_store %arg10[%c0_30, %c0_31, %c0_32], %98 {strides = array<i32>} : memref<1x4x256xf32, #tpu.memory_space<vmem>>, vector<1x4x256xf32>,
    return
  }
  func.func @transform_0(%arg0: i32, %arg1: i32) -> (i32, i32, i32) {
    %c0_i32 = arith.constant 0 : i32
    %c0_i32_0 = arith.constant 0 : i32
    %c0_i32_1 = arith.constant 0 : i32
    return %arg0, %c0_i32, %c0_i32_0 : i32, i32, i32
  }
  func.func @transform_1(%arg0: i32, %arg1: i32) -> (i32, i32) {
    %c0_i32 = arith.constant 0 : i32
    %c0_i32_0 = arith.constant 0 : i32
    %c0_i32_1 = arith.constant 0 : i32
    return %c0_i32, %c0_i32_0 : i32, i32
  }
  func.func @transform_2(%arg0: i32, %arg1: i32) -> (i32, i32) {
    %c0_i32 = arith.constant 0 : i32
    %c0_i32_0 = arith.constant 0 : i32
    return %arg1, %c0_i32 : i32, i32
  }
  func.func @transform_3(%arg0: i32, %arg1: i32) -> (i32, i32) {
    %c0_i32 = arith.constant 0 : i32
    %c0_i32_0 = arith.constant 0 : i32
    return %arg1, %c0_i32 : i32, i32
  }
  func.func @transform_4(%arg0: i32, %arg1: i32) -> (i32, i32) {
    %c0_i32 = arith.constant 0 : i32
    %c0_i32_0 = arith.constant 0 : i32
    return %arg1, %c0_i32 : i32, i32
  }
  func.func @transform_5(%arg0: i32, %arg1: i32) -> (i32, i32) {
    %c0_i32 = arith.constant 0 : i32
    %c0_i32_0 = arith.constant 0 : i32
    return %arg1, %c0_i32 : i32, i32
  }
  func.func @transform_6(%arg0: i32, %arg1: i32) -> (i32, i32) {
    %c0_i32 = arith.constant 0 : i32
    %c0_i32_0 = arith.constant 0 : i32
    return %c0_i32, %arg1 : i32, i32
  }
  func.func @transform_7(%arg0: i32, %arg1: i32) -> (i32, i32) {
    %c0_i32 = arith.constant 0 : i32
    %c0_i32_0 = arith.constant 0 : i32
    %c0_i32_1 = arith.constant 0 : i32
    return %c0_i32, %c0_i32_0 : i32, i32
  }
  func.func @transform_8(%arg0: i32, %arg1: i32) -> (i32, i32, i32) {
    %c0_i32 = arith.constant 0 : i32
    %c0_i32_0 = arith.constant 0 : i32
    %c0_i32_1 = arith.constant 0 : i32
    return %arg0, %c0_i32, %c0_i32_0 : i32, i32, i32
  }
}

</mosaic_0001>

<llo_original>
// kernel: tpu_custom_call.1
$region0: #{tpu_custom_call.1}
  #allocation0 [shape = 'u32[]', space=smem, size = 0x4, offset = 0x4, fixed_abs, tag = 'smem constant byte address 0x4 - core index']
  #allocation1 [shape = 'u32[144,128]{1,0:T(1,128)}', space=vmem, size = 0x12000, scoped, tag = 'internal scratch']
  %s0 = inlined_call_operand.vmem [shape: f32[2,4,256], index: 0, kind: input, shape index: {}]
  %s1 = inlined_call_operand.vmem [shape: f32[9,256], index: 1, kind: input, shape index: {}]
  %s2 = inlined_call_operand.vmem [shape: bf16[16,4], index: 2, kind: input, shape index: {}]
  %s3 = inlined_call_operand.vmem [shape: f32[16,1], index: 3, kind: input, shape index: {}]
  %s4 = inlined_call_operand.vmem [shape: f32[16,9], index: 4, kind: input, shape index: {}]
  %s5 = inlined_call_operand.vmem [shape: f32[16,1], index: 5, kind: input, shape index: {}]
  %s6 = inlined_call_operand.vmem [shape: bf16[4,16], index: 6, kind: input, shape index: {}]
  %s7 = inlined_call_operand.vmem [shape: f32[4,1], index: 7, kind: input, shape index: {}]
  %s8 = inlined_call_operand.hbm [shape: f32[2,4,256], index: 8, kind: output, shape index: {}]
  %s9 = sld [smem:[#allocation0]]
  $region69: #{tpu_custom_call.1} parent=0
    _
  %s11 = ssub.s32 1, %s9
  %s12 = scalar_select 0, %s11, %s9
  $region1: #{tpu_custom_call.1} parent=0
    #allocation2 [shape = 'u8[8192]{0}', space=vmem, size = 0x2000, scoped, tag = 'output window, operand 0']
    #allocation3 [shape = 's32[2]{0}', space=sflag, size = 0x8, scoped, tag = 'scoped memory for tpu_custom_call.1']
    %13 = vsyncpa [#allocation3], 0
    %s14 = scalar_lea.sflag [#allocation3], 1
    %15 = vsyncpa %s14, 0
    loop: start=0, step=1, limit=4
    $region2: #{tpu_custom_call.1} parent=1 // loop_pre_header
      _
    $region3: #{tpu_custom_call.1} parent=1 // loop_header
      %s17 = sphi 0, %s21
      %p18 = scmp.ge.s32.totalorder %s17, 4
      %s24 = sphi 0, %s36
      %s25 = sphi 0, %s32
      %s26 = sphi 0, %s24
      %s27 = sphi 0, %s25
      %s28 = sphi 0, %s26
      %s29 = sphi 0, %s27
      %s39 = sphi 0, %s41
      %s42 = sphi 0, %s39
      %s43 = sphi 0, %s42
      %s59 = sphi 0, %s43
      %s63 = sphi 0, %s63
      %s65 = sphi 0, %s63
      %s66 = sphi 0, %s65
      %s80 = sphi 0, %s66
      %s86 = sphi 0, %s88
      %s89 = sphi 0, %s86
      %s90 = sphi 0, %s89
      %s106 = sphi 0, %s90
      %s112 = sphi 0, %s114
      %s115 = sphi 0, %s112
      %s116 = sphi 0, %s115
      %s132 = sphi 0, %s116
      %s138 = sphi 0, %s140
      %s141 = sphi 0, %s138
      %s142 = sphi 0, %s141
      %s158 = sphi 0, %s142
      %s164 = sphi 0, %s166
      %s167 = sphi 0, %s164
      %s168 = sphi 0, %s167
      %s184 = sphi 0, %s168
      %s190 = sphi 0, %s192
      %s193 = sphi 0, %s190
      %s194 = sphi 0, %s193
      %s210 = sphi 0, %s194
      %s214 = sphi 0, %s214
      %s216 = sphi 0, %s214
      %s217 = sphi 0, %s216
      %s231 = sphi 0, %s217
      %s237 = sphi 0, %s239
      %s240 = sphi 0, %s237
      %s241 = sphi 0, %s240
      %s257 = sphi 0, %s241
    $region4: #{tpu_custom_call.1} parent=1 // loop_header_branch
      %20 = sbr.rel (%p18) target = $region8
    $region5: #{tpu_custom_call.1} parent=1 // loop_body
      %s22 = ssub.s32 %s17, 1
      %s23 = ssub.s32 %s17, 2
      %s30 = sadd.s32 1, %s25
      %p31 = scmp.ge.s32.totalorder %s30, 1
      %s32 = scalar_select %p31, 0, %s30
      %s33 = sadd.s32 1, %s24
      %s34 = scalar_select %p31, %s33, %s24
      %p35 = scmp.ge.s32.totalorder %s34, 2
      %s36 = scalar_select %p35, 0, %s34
      %s37 = ssub.s32 %s24, %s36
      %p38 = scmp.eq.s32.totalorder %s37, 0
      %s40 = sadd.s32 %s39, 1
      %s41 = scalar_select %p38, %s39, %s40
      %p44 = pneg %p38
      %p45 = scmp.eq.s32.totalorder %s17, 1
      %p46 = por %p44, %p45
      %p47 = scmp.ne.s32.totalorder %s39, %s42
      %p48 = scmp.eq.s32.totalorder %s17, 0
      %p49 = por %p47, %p48
      %p50 = scmp.ne.s32.totalorder %s39, %s42
      %p51 = scmp.eq.s32.totalorder %s22, 1
      %p52 = por %p50, %p51
      %p53 = scmp.ne.s32.totalorder %s42, %s43
      %p54 = scmp.eq.s32.totalorder %s22, 0
      %p55 = por %p53, %p54
      %p56 = scmp.ne.s32.totalorder %s42, %s43
      %p57 = scmp.eq.s32.totalorder %s23, 1
      %p58 = por %p56, %p57
      %p60 = scmp.ne.s32.totalorder %s43, %s59
      %p61 = scmp.eq.s32.totalorder %s23, 0
      %p62 = por %p60, %p61
      %s64 = sadd.s32 %s63, 1
      %p67 = scmp.eq.s32.totalorder %s17, 1
      %p68 = scmp.ne.s32.totalorder %s63, %s65
      %p69 = scmp.eq.s32.totalorder %s17, 0
      %p70 = por %p68, %p69
      %p71 = scmp.ne.s32.totalorder %s63, %s65
      %p72 = scmp.eq.s32.totalorder %s22, 1
      %p73 = por %p71, %p72
      %p74 = scmp.ne.s32.totalorder %s65, %s66
      %p75 = scmp.eq.s32.totalorder %s22, 0
      %p76 = por %p74, %p75
      %p77 = scmp.ne.s32.totalorder %s65, %s66
      %p78 = scmp.eq.s32.totalorder %s23, 1
      %p79 = por %p77, %p78
      %p81 = scmp.ne.s32.totalorder %s66, %s80
      %p82 = scmp.eq.s32.totalorder %s23, 0
      %p83 = por %p81, %p82
      %s84 = ssub.s32 %s25, %s32
      %p85 = scmp.eq.s32.totalorder %s84, 0
      %s87 = sadd.s32 %s86, 1
      %s88 = scalar_select %p85, %s86, %s87
      %p91 = pneg %p85
      %p92 = scmp.eq.s32.totalorder %s17, 1
      %p93 = por %p91, %p92
      %p94 = scmp.ne.s32.totalorder %s86, %s89
      %p95 = scmp.eq.s32.totalorder %s17, 0
      %p96 = por %p94, %p95
      %p97 = scmp.ne.s32.totalorder %s86, %s89
      %p98 = scmp.eq.s32.totalorder %s22, 1
      %p99 = por %p97, %p98
      %p100 = scmp.ne.s32.totalorder %s89, %s90
      %p101 = scmp.eq.s32.totalorder %s22, 0
      %p102 = por %p100, %p101
      %p103 = scmp.ne.s32.totalorder %s89, %s90
      %p104 = scmp.eq.s32.totalorder %s23, 1
      %p105 = por %p103, %p104
      %p107 = scmp.ne.s32.totalorder %s90, %s106
      %p108 = scmp.eq.s32.totalorder %s23, 0
      %p109 = por %p107, %p108
      %s110 = ssub.s32 %s25, %s32
      %p111 = scmp.eq.s32.totalorder %s110, 0
      %s113 = sadd.s32 %s112, 1
      %s114 = scalar_select %p111, %s112, %s113
      %p117 = pneg %p111
      %p118 = scmp.eq.s32.totalorder %s17, 1
      %p119 = por %p117, %p118
      %p120 = scmp.ne.s32.totalorder %s112, %s115
      %p121 = scmp.eq.s32.totalorder %s17, 0
      %p122 = por %p120, %p121
      %p123 = scmp.ne.s32.totalorder %s112, %s115
      %p124 = scmp.eq.s32.totalorder %s22, 1
      %p125 = por %p123, %p124
      %p126 = scmp.ne.s32.totalorder %s115, %s116
      %p127 = scmp.eq.s32.totalorder %s22, 0
      %p128 = por %p126, %p127
      %p129 = scmp.ne.s32.totalorder %s115, %s116
      %p130 = scmp.eq.s32.totalorder %s23, 1
      %p131 = por %p129, %p130
      %p133 = scmp.ne.s32.totalorder %s116, %s132
      %p134 = scmp.eq.s32.totalorder %s23, 0
      %p135 = por %p133, %p134
      %s136 = ssub.s32 %s25, %s32
      %p137 = scmp.eq.s32.totalorder %s136, 0
      %s139 = sadd.s32 %s138, 1
      %s140 = scalar_select %p137, %s138, %s139
      %p143 = pneg %p137
      %p144 = scmp.eq.s32.totalorder %s17, 1
      %p145 = por %p143, %p144
      %p146 = scmp.ne.s32.totalorder %s138, %s141
      %p147 = scmp.eq.s32.totalorder %s17, 0
      %p148 = por %p146, %p147
      %p149 = scmp.ne.s32.totalorder %s138, %s141
      %p150 = scmp.eq.s32.totalorder %s22, 1
      %p151 = por %p149, %p150
      %p152 = scmp.ne.s32.totalorder %s141, %s142
      %p153 = scmp.eq.s32.totalorder %s22, 0
      %p154 = por %p152, %p153
      %p155 = scmp.ne.s32.totalorder %s141, %s142
      %p156 = scmp.eq.s32.totalorder %s23, 1
      %p157 = por %p155, %p156
      %p159 = scmp.ne.s32.totalorder %s142, %s158
      %p160 = scmp.eq.s32.totalorder %s23, 0
      %p161 = por %p159, %p160
      %s162 = ssub.s32 %s25, %s32
      %p163 = scmp.eq.s32.totalorder %s162, 0
      %s165 = sadd.s32 %s164, 1
      %s166 = scalar_select %p163, %s164, %s165
      %p169 = pneg %p163
      %p170 = scmp.eq.s32.totalorder %s17, 1
      %p171 = por %p169, %p170
      %p172 = scmp.ne.s32.totalorder %s164, %s167
      %p173 = scmp.eq.s32.totalorder %s17, 0
      %p174 = por %p172, %p173
      %p175 = scmp.ne.s32.totalorder %s164, %s167
      %p176 = scmp.eq.s32.totalorder %s22, 1
      %p177 = por %p175, %p176
      %p178 = scmp.ne.s32.totalorder %s167, %s168
      %p179 = scmp.eq.s32.totalorder %s22, 0
      %p180 = por %p178, %p179
      %p181 = scmp.ne.s32.totalorder %s167, %s168
      %p182 = scmp.eq.s32.totalorder %s23, 1
      %p183 = por %p181, %p182
      %p185 = scmp.ne.s32.totalorder %s168, %s184
      %p186 = scmp.eq.s32.totalorder %s23, 0
      %p187 = por %p185, %p186
      %s188 = ssub.s32 %s25, %s32
      %p189 = scmp.eq.s32.totalorder %s188, 0
      %s191 = sadd.s32 %s190, 1
      %s192 = scalar_select %p189, %s190, %s191
      %p195 = pneg %p189
      %p196 = scmp.eq.s32.totalorder %s17, 1
      %p197 = por %p195, %p196
      %p198 = scmp.ne.s32.totalorder %s190, %s193
      %p199 = scmp.eq.s32.totalorder %s17, 0
      %p200 = por %p198, %p199
      %p201 = scmp.ne.s32.totalorder %s190, %s193
      %p202 = scmp.eq.s32.totalorder %s22, 1
      %p203 = por %p201, %p202
      %p204 = scmp.ne.s32.totalorder %s193, %s194
      %p205 = scmp.eq.s32.totalorder %s22, 0
      %p206 = por %p204, %p205
      %p207 = scmp.ne.s32.totalorder %s193, %s194
      %p208 = scmp.eq.s32.totalorder %s23, 1
      %p209 = por %p207, %p208
      %p211 = scmp.ne.s32.totalorder %s194, %s210
      %p212 = scmp.eq.s32.totalorder %s23, 0
      %p213 = por %p211, %p212
      %s215 = sadd.s32 %s214, 1
      %p218 = scmp.eq.s32.totalorder %s17, 1
      %p219 = scmp.ne.s32.totalorder %s214, %s216
      %p220 = scmp.eq.s32.totalorder %s17, 0
      %p221 = por %p219, %p220
      %p222 = scmp.ne.s32.totalorder %s214, %s216
      %p223 = scmp.eq.s32.totalorder %s22, 1
      %p224 = por %p222, %p223
      %p225 = scmp.ne.s32.totalorder %s216, %s217
      %p226 = scmp.eq.s32.totalorder %s22, 0
      %p227 = por %p225, %p226
      %p228 = scmp.ne.s32.totalorder %s216, %s217
      %p229 = scmp.eq.s32.totalorder %s23, 1
      %p230 = por %p228, %p229
      %p232 = scmp.ne.s32.totalorder %s217, %s231
      %p233 = scmp.eq.s32.totalorder %s23, 0
      %p234 = por %p232, %p233
      %s235 = ssub.s32 %s24, %s36
      %p236 = scmp.eq.s32.totalorder %s235, 0
      %s238 = sadd.s32 %s237, 1
      %s239 = scalar_select %p236, %s237, %s238
      %p242 = pneg %p236
      %p243 = scmp.eq.s32.totalorder %s17, 1
      %p244 = por %p242, %p243
      %p245 = scmp.ne.s32.totalorder %s237, %s240
      %p246 = scmp.eq.s32.totalorder %s17, 0
      %p247 = por %p245, %p246
      %p248 = scmp.ne.s32.totalorder %s237, %s240
      %p249 = scmp.eq.s32.totalorder %s22, 1
      %p250 = por %p248, %p249
      %p251 = scmp.ne.s32.totalorder %s240, %s241
      %p252 = scmp.eq.s32.totalorder %s22, 0
      %p253 = por %p251, %p252
      %p254 = scmp.ne.s32.totalorder %s240, %s241
      %p255 = scmp.eq.s32.totalorder %s23, 1
      %p256 = por %p254, %p255
      %p258 = scmp.ne.s32.totalorder %s241, %s257
      %p259 = scmp.eq.s32.totalorder %s23, 0
      %p260 = por %p258, %p259
      %p261 = scmp.le.s32.totalorder 1, %s17
      %p262 = scmp.lt.s32.totalorder %s17, 3
      %p263 = pnand %p261, %p262
      %p264 = pneg %p263
      // Predicated region
      $region9: #{tpu_custom_call.1} parent=5 // pred_check
        _
      $region10: #{tpu_custom_call.1} parent=5 // pred_check_branch
        %266 = sbr.rel (%p263) target = $region12
      $region11: #{tpu_custom_call.1} parent=5 // pred_region
        %s267 = ssub.s32 %s17, 1
        // Predicated region
        $region13: #{tpu_custom_call.1} parent=11 // pred_check
          %p268 = pneg %p76
        $region14: #{tpu_custom_call.1} parent=11 // pred_check_branch
          %270 = sbr.rel (%p268) target = $region16
        $region15: #{tpu_custom_call.1} parent=11 // pred_region
          _
        $region16: #{tpu_custom_call.1} parent=11 // pred_fallthru
          _
        // Predicated region
        $region17: #{tpu_custom_call.1} parent=11 // pred_check
          %p271 = pneg %p102
        $region18: #{tpu_custom_call.1} parent=11 // pred_check_branch
          %273 = sbr.rel (%p271) target = $region20
        $region19: #{tpu_custom_call.1} parent=11 // pred_region
          %s274 = smul.u32 2, %s27
          %p275 = scmp.lt.s32.totalorder %s274, 1
          %s276 = scalar_select %p275, %s274, 1
          %s277 = smul.addr %s276, 4
          %s278 = scalar_lea.vmem %s2, %s277
          %s279 = smul.u32 2, %s27
        $region20: #{tpu_custom_call.1} parent=11 // pred_fallthru
          _
        // Predicated region
        $region21: #{tpu_custom_call.1} parent=11 // pred_check
          %p280 = pneg %p128
        $region22: #{tpu_custom_call.1} parent=11 // pred_check_branch
          %282 = sbr.rel (%p280) target = $region24
        $region23: #{tpu_custom_call.1} parent=11 // pred_region
          %s283 = smul.u32 2, %s27
          %p284 = scmp.lt.s32.totalorder %s283, 1
          %s285 = scalar_select %p284, %s283, 1
          %s286 = smul.addr %s285, 8
          %s287 = scalar_lea.vmem %s3, %s286
          %s288 = smul.u32 2, %s27
        $region24: #{tpu_custom_call.1} parent=11 // pred_fallthru
          _
        // Predicated region
        $region25: #{tpu_custom_call.1} parent=11 // pred_check
          %p289 = pneg %p154
        $region26: #{tpu_custom_call.1} parent=11 // pred_check_branch
          %291 = sbr.rel (%p289) target = $region28
        $region27: #{tpu_custom_call.1} parent=11 // pred_region
          %s292 = smul.u32 2, %s27
          %p293 = scmp.lt.s32.totalorder %s292, 1
          %s294 = scalar_select %p293, %s292, 1
          %s295 = smul.addr %s294, 8
          %s296 = scalar_lea.vmem %s4, %s295
          %s297 = smul.u32 2, %s27
        $region28: #{tpu_custom_call.1} parent=11 // pred_fallthru
          _
        // Predicated region
        $region29: #{tpu_custom_call.1} parent=11 // pred_check
          %p298 = pneg %p180
        $region30: #{tpu_custom_call.1} parent=11 // pred_check_branch
          %300 = sbr.rel (%p298) target = $region32
        $region31: #{tpu_custom_call.1} parent=11 // pred_region
          %s301 = smul.u32 2, %s27
          %p302 = scmp.lt.s32.totalorder %s301, 1
          %s303 = scalar_select %p302, %s301, 1
          %s304 = smul.addr %s303, 8
          %s305 = scalar_lea.vmem %s5, %s304
          %s306 = smul.u32 2, %s27
        $region32: #{tpu_custom_call.1} parent=11 // pred_fallthru
          _
        // Predicated region
        $region33: #{tpu_custom_call.1} parent=11 // pred_check
          %p307 = pneg %p206
        $region34: #{tpu_custom_call.1} parent=11 // pred_check_branch
          %309 = sbr.rel (%p307) target = $region36
        $region35: #{tpu_custom_call.1} parent=11 // pred_region
          %p310 = scmp.lt.s32.totalorder %s27, 0
          %s311 = scalar_select %p310, %s27, 0
          %s312 = smul.addr %s311, 2
          %s313 = scalar_lea.vmem %s6, %s312
        $region36: #{tpu_custom_call.1} parent=11 // pred_fallthru
          _
        // Predicated region
        $region37: #{tpu_custom_call.1} parent=11 // pred_check
          %p314 = pneg %p227
        $region38: #{tpu_custom_call.1} parent=11 // pred_check_branch
          %316 = sbr.rel (%p314) target = $region40
        $region39: #{tpu_custom_call.1} parent=11 // pred_region
          _
        $region40: #{tpu_custom_call.1} parent=11 // pred_fallthru
          _
      $region12: #{tpu_custom_call.1} parent=5 // pred_fallthru
        _
      %p317 = scmp.lt.s32.totalorder %s17, 2
      // Predicated region
      $region41: #{tpu_custom_call.1} parent=5 // pred_check
        %p318 = pneg %p317
      $region42: #{tpu_custom_call.1} parent=5 // pred_check_branch
        %320 = sbr.rel (%p318) target = $region44
      $region43: #{tpu_custom_call.1} parent=5 // pred_region
        // Predicated region
        $region45: #{tpu_custom_call.1} parent=43 // pred_check
          %p321 = pneg %p49
        $region46: #{tpu_custom_call.1} parent=43 // pred_check_branch
          %323 = sbr.rel (%p321) target = $region48
        $region47: #{tpu_custom_call.1} parent=43 // pred_region
          %p324 = scmp.lt.s32.totalorder %s24, 1
          %s325 = scalar_select %p324, %s24, 1
          %s326 = smul.addr %s325, 2
          %s327 = smul.addr %s326, 4
          %s328 = scalar_lea.vmem %s0, %s327
        $region48: #{tpu_custom_call.1} parent=43 // pred_fallthru
          _
      $region44: #{tpu_custom_call.1} parent=5 // pred_fallthru
        _
      %p329 = scmp.le.s32.totalorder 1, %s17
      %p330 = scmp.lt.s32.totalorder %s17, 3
      %p331 = pnand %p329, %p330
      %p332 = pneg %p331
      // Predicated region
      $region49: #{tpu_custom_call.1} parent=5 // pred_check
        _
      $region50: #{tpu_custom_call.1} parent=5 // pred_check_branch
        %334 = sbr.rel (%p331) target = $region52
      $region51: #{tpu_custom_call.1} parent=5 // pred_region
        %s335 = ssub.s32 %s17, 1
        %p336 = scmp.lt.s32.totalorder %s26, 1
        %s337 = scalar_select %p336, %s26, 1
        %s338 = smul.addr %s337, 2
        %s339 = smul.addr %s338, 4
        %s340 = scalar_lea.vmem %s0, %s339
        %p341 = pneg %p55
        %p342 = pneg %p52
        %p343 = pneg %p76
        %p344 = pneg %p73
        %s345 = smul.u32 2, %s27
        %p346 = scmp.lt.s32.totalorder %s345, 1
        %s347 = scalar_select %p346, %s345, 1
        %s348 = smul.addr %s347, 4
        %s349 = scalar_lea.vmem %s2, %s348
        %p350 = pneg %p102
        %p351 = pneg %p99
        %s352 = smul.u32 2, %s27
        %p353 = scmp.lt.s32.totalorder %s352, 1
        %s354 = scalar_select %p353, %s352, 1
        %s355 = smul.addr %s354, 8
        %s356 = scalar_lea.vmem %s3, %s355
        %p357 = pneg %p128
        %p358 = pneg %p125
        %s359 = smul.u32 2, %s27
        %p360 = scmp.lt.s32.totalorder %s359, 1
        %s361 = scalar_select %p360, %s359, 1
        %s362 = smul.addr %s361, 8
        %s363 = scalar_lea.vmem %s4, %s362
        %p364 = pneg %p154
        %p365 = pneg %p151
        %s366 = smul.u32 2, %s27
        %p367 = scmp.lt.s32.totalorder %s366, 1
        %s368 = scalar_select %p367, %s366, 1
        %s369 = smul.addr %s368, 8
        %s370 = scalar_lea.vmem %s5, %s369
        %p371 = pneg %p180
        %p372 = pneg %p177
        %p373 = scmp.lt.s32.totalorder %s27, 0
        %s374 = scalar_select %p373, %s27, 0
        %s375 = smul.addr %s374, 2
        %s376 = scalar_lea.vmem %s6, %s375
        %p377 = pneg %p206
        %p378 = pneg %p203
        %p379 = pneg %p227
        %p380 = pneg %p224
        %p381 = pneg %p253
        %p382 = pneg %p250
        %s383 = sand.u32 %s240, 1
        %s384 = scalar_lea.sflag [#allocation3], %s383
        %s385 = sand.u32 %s240, 1
        %s386 = smul.addr %s385, 8
        %s387 = scalar_lea.vmem [#allocation2], %s386
        %p388 = scmp.lt.s32.totalorder %s26, 1
        %s389 = scalar_select %p388, %s26, 1
        %s390 = smul.addr %s389, 2
        %s391 = smul.addr %s390, 4
        %s392 = scalar_lea.vmem %s0, %s391
        %s393 = smul.u32 2, %s27
        %p394 = scmp.lt.s32.totalorder %s393, 1
        %s395 = scalar_select %p394, %s393, 1
        %s396 = smul.addr %s395, 4
        %s397 = scalar_lea.vmem %s2, %s396
        %s398 = smul.u32 2, %s27
        %s399 = smul.u32 2, %s27
        %p400 = scmp.lt.s32.totalorder %s399, 1
        %s401 = scalar_select %p400, %s399, 1
        %s402 = smul.addr %s401, 8
        %s403 = scalar_lea.vmem %s3, %s402
        %s404 = smul.u32 2, %s27
        %s405 = smul.u32 2, %s27
        %p406 = scmp.lt.s32.totalorder %s405, 1
        %s407 = scalar_select %p406, %s405, 1
        %s408 = smul.addr %s407, 8
        %s409 = scalar_lea.vmem %s4, %s408
        %s410 = smul.u32 2, %s27
        %s411 = smul.u32 2, %s27
        %p412 = scmp.lt.s32.totalorder %s411, 1
        %s413 = scalar_select %p412, %s411, 1
        %s414 = smul.addr %s413, 8
        %s415 = scalar_lea.vmem %s5, %s414
        %s416 = smul.u32 2, %s27
        %p417 = scmp.lt.s32.totalorder %s27, 0
        %s418 = scalar_select %p417, %s27, 0
        %s419 = smul.addr %s418, 2
        %s420 = scalar_lea.vmem %s6, %s419
        %v422 = vld [vmem:[%s392] sm:$0xff]
        %v423 = vld [vmem:[%s397] sm:$0xf]
        %v424 = vld [vmem:[%s397 + $0x4] sm:$0xf]
        %v426 = vcombine.high %v422, %v422
        %v428 = vpack.c.bf16 %v422, %v422
        %v429 = vpack.c.bf16 %v426, %v426
        %v430 = vld [vmem:[%s403] sm:$0xff]
        %v431 = vld [vmem:[%s403 + $0x8] sm:$0xff]
        %433 = vset.pattern.permute.xlu0 0
        %434 = vperm.xlu0 %433, %v430
        %v435 = vpop.permute.xlu0 %434
        %438 = vset.pattern.permute.xlu0 0
        %439 = vperm.xlu0 %438, %v431
        %v440 = vpop.permute.xlu0 %439
        %v444 = vunpack.c.l.b16 %v423
        %v445 = vunpack.c.l.b16 %v424
        %v446 = vpack.c.b16 %v445, %v444
        %vm447 = vcmask 31744
        %v449 = vsel %vm447, %v446, 0
        %vm451 = vcmask 1041408
        %v453 = vsel %vm451, %v428, 0
        %v456 = vsel %vm451, %v429, 0
        %458 = vmatprep.subr.bf16.mxu0 %v456
        %459 = vmatpush1.bf16.msra.mxu0 %v453
        %460 = vmatprep.subr.bf16.mxu0 0
        %461 = vmatpush1.bf16.msra.mxu0 0
        %462 = vmatprep.subr.bf16.mxu0 0
        %463 = vmatpush1.bf16.msra.mxu0 0
        %464 = vmatprep.subr.bf16.mxu0 0
        %465 = vmatpush1.bf16.msra.mxu0 0
        %466 = vmatprep.subr.bf16.mxu0 0
        %467 = vmatpush1.bf16.msra.mxu0 0
        %468 = vmatprep.subr.bf16.mxu0 0
        %469 = vmatpush1.bf16.msra.mxu0 0
        %470 = vmatprep.subr.bf16.mxu0 0
        %471 = vmatpush1.bf16.msra.mxu0 0
        %472 = vmatprep.subr.bf16.mxu0 0
        %473 = vmatpush1.bf16.msra.mxu0 0
        %474 = vmatprep.subr.bf16.mxu0 0
        %475 = vmatpush1.bf16.msra.mxu0 0
        %476 = vmatprep.subr.bf16.mxu0 0
        %477 = vmatpush1.bf16.msra.mxu0 0
        %478 = vmatprep.subr.bf16.mxu0 0
        %479 = vmatpush1.bf16.msra.mxu0 0
        %480 = vmatprep.subr.bf16.mxu0 0
        %481 = vmatpush1.bf16.msra.mxu0 0
        %482 = vmatprep.subr.bf16.mxu0 0
        %483 = vmatpush1.bf16.msra.mxu0 0
        %484 = vmatprep.subr.bf16.mxu0 0
        %485 = vmatpush1.bf16.msra.mxu0 0
        %486 = vmatprep.subr.bf16.mxu0 0
        %487 = vmatpush1.bf16.msra.mxu0 0
        %488 = vmatprep.subr.bf16.mxu0 0
        %489 = vmatpush1.bf16.msra.mxu0 0
        %490 = vmatprep.mubr.bf16.mxu0 0
        %491 = vmatmul.mubr.bf16.gmra.mrb[0].mxu0 %v449
        %v492 = vpop.f32.mrb[0].mxu0
        %v493 = vadd.f32 %v435, %v492
        %v494 = vpop.f32.mrb[0].mxu0
        %v495 = vadd.f32 %v435, %v494
        %v496 = vpop.f32.mrb[0].mxu0
        %v497 = vadd.f32 %v440, %v496
        %v498 = vpop.f32.mrb[0].mxu0
        %v499 = vadd.f32 %v440, %v498
        %500 = vdwg.mxu0
        %v501 = vmax.f32 %v493, 0.0
        %v502 = vmax.f32 %v495, 0.0
        %v503 = vmax.f32 %v497, 0.0
        %v504 = vmax.f32 %v499, 0.0
        %v505 = vmin.f32 %v501, 6.0
        %v506 = vmin.f32 %v502, 6.0
        %v507 = vmin.f32 %v503, 6.0
        %v508 = vmin.f32 %v504, 6.0
        %v509 = vld [vmem:[%s409] sm:$0xff]
        %v510 = vld [vmem:[%s409 + $0x8] sm:$0xff]
        %512 = vset.pattern.permute.xlu0 4
        %513 = vperm.xlu0 %512, %v509
        %v514 = vpop.permute.xlu0 %513
        %517 = vset.pattern.permute.xlu0 4
        %518 = vperm.xlu0 %517, %v510
        %v519 = vpop.permute.xlu0 %518
        %v521 = vmul.f32 %v505, %v514
        %v522 = vmul.f32 %v506, %v514
        %v523 = vmul.f32 %v507, %v519
        %v524 = vmul.f32 %v508, %v519
        %525 = vrot.lane.b32.xlu0 %v505, 17
        %v526 = vpop.permute.xlu0 %525
        %527 = vrot.lane.b32.xlu0 %v507, 17
        %v528 = vpop.permute.xlu0 %527
        %529 = vrot.lane.b32.xlu0 %v506, 17
        %v530 = vpop.permute.xlu0 %529
        %531 = vrot.lane.b32.xlu0 %v508, 17
        %v532 = vpop.permute.xlu0 %531
        %v533 = vlaneseq
        %v534 = vand.u32 %v533, 127
        %vm535 = vcmp.lt.s32.totalorder %v534, 17
        %v536 = vsel %vm535, %v526, %v530
        %v537 = vsel %vm535, %v528, %v532
        %v538 = vsel %vm535, %v530, %v526
        %v539 = vsel %vm535, %v532, %v528
        %v540 = vld [vmem:[%s1] ss:$8 sm:$0x3]
        %v542 = vlaneseq
        %v543 = vshrl.u32 %v542, 7
        %v544 = vsub.s32 0, %v543
        %v545 = vrot.slane %v540, %v544
        %v546 = vlaneseq
        %v547 = vshrl.u32 %v546, 7
        %v548 = vsub.s32 1, %v547
        %v549 = vrot.slane %v540, %v548
        %v552 = vmul.f32 %v538, %v545
        %v553 = vmul.f32 %v536, %v549
        %v554 = vmul.f32 %v539, %v545
        %v555 = vmul.f32 %v537, %v549
        %556 = vset.pattern.permute.xlu0 0
        %557 = vperm.xlu0 %556, %v509
        %v558 = vpop.permute.xlu0 %557
        %560 = vset.pattern.permute.xlu0 0
        %561 = vperm.xlu0 %560, %v510
        %v562 = vpop.permute.xlu0 %561
        %v564 = vmul.f32 %v552, %v558
        %v565 = vmul.f32 %v553, %v558
        %v566 = vmul.f32 %v554, %v562
        %v567 = vmul.f32 %v555, %v562
        %v568 = vadd.f32 %v521, %v564
        %v569 = vadd.f32 %v522, %v565
        %v570 = vadd.f32 %v523, %v566
        %v571 = vadd.f32 %v524, %v567
        %572 = vrot.lane.b32.xlu0 %v505, 16
        %v573 = vpop.permute.xlu0 %572
        %574 = vrot.lane.b32.xlu0 %v507, 16
        %v575 = vpop.permute.xlu0 %574
        %576 = vrot.lane.b32.xlu0 %v506, 16
        %v577 = vpop.permute.xlu0 %576
        %578 = vrot.lane.b32.xlu0 %v508, 16
        %v579 = vpop.permute.xlu0 %578
        %vm580 = vcmp.lt.s32.totalorder %v534, 16
        %v581 = vsel %vm580, %v573, %v577
        %v582 = vsel %vm580, %v575, %v579
        %v583 = vsel %vm580, %v577, %v573
        %v584 = vsel %vm580, %v579, %v575
        %s585 = scalar_lea.vmem %s1, 1
        %v586 = vld [vmem:[%s585] ss:$8 sm:$0x3]
        %v588 = vlaneseq
        %v589 = vshrl.u32 %v588, 7
        %v590 = vsub.s32 0, %v589
        %v591 = vrot.slane %v586, %v590
        %v592 = vlaneseq
        %v593 = vshrl.u32 %v592, 7
        %v594 = vsub.s32 1, %v593
        %v595 = vrot.slane %v586, %v594
        %v598 = vmul.f32 %v583, %v591
        %v599 = vmul.f32 %v581, %v595
        %v600 = vmul.f32 %v584, %v591
        %v601 = vmul.f32 %v582, %v595
        %602 = vset.pattern.permute.xlu0 1
        %603 = vperm.xlu0 %602, %v509
        %v604 = vpop.permute.xlu0 %603
        %606 = vset.pattern.permute.xlu0 1
        %607 = vperm.xlu0 %606, %v510
        %v608 = vpop.permute.xlu0 %607
        %v610 = vmul.f32 %v598, %v604
        %v611 = vmul.f32 %v599, %v604
        %v612 = vmul.f32 %v600, %v608
        %v613 = vmul.f32 %v601, %v608
        %v614 = vadd.f32 %v568, %v610
        %v615 = vadd.f32 %v569, %v611
        %v616 = vadd.f32 %v570, %v612
        %v617 = vadd.f32 %v571, %v613
        %618 = vrot.lane.b32.xlu0 %v505, 15
        %v619 = vpop.permute.xlu0 %618
        %620 = vrot.lane.b32.xlu0 %v507, 15
        %v621 = vpop.permute.xlu0 %620
        %622 = vrot.lane.b32.xlu0 %v506, 15
        %v623 = vpop.permute.xlu0 %622
        %624 = vrot.lane.b32.xlu0 %v508, 15
        %v625 = vpop.permute.xlu0 %624
        %vm626 = vcmp.lt.s32.totalorder %v534, 15
        %v627 = vsel %vm626, %v619, %v623
        %v628 = vsel %vm626, %v621, %v625
        %v629 = vsel %vm626, %v623, %v619
        %v630 = vsel %vm626, %v625, %v621
        %s631 = scalar_lea.vmem %s1, 2
        %v632 = vld [vmem:[%s631] ss:$8 sm:$0x3]
        %v634 = vlaneseq
        %v635 = vshrl.u32 %v634, 7
        %v636 = vsub.s32 0, %v635
        %v637 = vrot.slane %v632, %v636
        %v638 = vlaneseq
        %v639 = vshrl.u32 %v638, 7
        %v640 = vsub.s32 1, %v639
        %v641 = vrot.slane %v632, %v640
        %v644 = vmul.f32 %v629, %v637
        %v645 = vmul.f32 %v627, %v641
        %v646 = vmul.f32 %v630, %v637
        %v647 = vmul.f32 %v628, %v641
        %648 = vset.pattern.permute.xlu0 2
        %649 = vperm.xlu0 %648, %v509
        %v650 = vpop.permute.xlu0 %649
        %652 = vset.pattern.permute.xlu0 2
        %653 = vperm.xlu0 %652, %v510
        %v654 = vpop.permute.xlu0 %653
        %v656 = vmul.f32 %v644, %v650
        %v657 = vmul.f32 %v645, %v650
        %v658 = vmul.f32 %v646, %v654
        %v659 = vmul.f32 %v647, %v654
        %v660 = vadd.f32 %v614, %v656
        %v661 = vadd.f32 %v615, %v657
        %v662 = vadd.f32 %v616, %v658
        %v663 = vadd.f32 %v617, %v659
        %664 = vrot.lane.b32.xlu0 %v505, 1
        %v665 = vpop.permute.xlu0 %664
        %666 = vrot.lane.b32.xlu0 %v507, 1
        %v667 = vpop.permute.xlu0 %666
        %668 = vrot.lane.b32.xlu0 %v506, 1
        %v669 = vpop.permute.xlu0 %668
        %670 = vrot.lane.b32.xlu0 %v508, 1
        %v671 = vpop.permute.xlu0 %670
        %vm672 = vcmp.lt.s32.totalorder %v534, 1
        %v673 = vsel %vm672, %v665, %v669
        %v674 = vsel %vm672, %v667, %v671
        %v675 = vsel %vm672, %v669, %v665
        %v676 = vsel %vm672, %v671, %v667
        %s677 = scalar_lea.vmem %s1, 3
        %v678 = vld [vmem:[%s677] ss:$8 sm:$0x3]
        %v680 = vlaneseq
        %v681 = vshrl.u32 %v680, 7
        %v682 = vsub.s32 0, %v681
        %v683 = vrot.slane %v678, %v682
        %v684 = vlaneseq
        %v685 = vshrl.u32 %v684, 7
        %v686 = vsub.s32 1, %v685
        %v687 = vrot.slane %v678, %v686
        %v690 = vmul.f32 %v675, %v683
        %v691 = vmul.f32 %v673, %v687
        %v692 = vmul.f32 %v676, %v683
        %v693 = vmul.f32 %v674, %v687
        %694 = vset.pattern.permute.xlu0 3
        %695 = vperm.xlu0 %694, %v509
        %v696 = vpop.permute.xlu0 %695
        %698 = vset.pattern.permute.xlu0 3
        %699 = vperm.xlu0 %698, %v510
        %v700 = vpop.permute.xlu0 %699
        %v702 = vmul.f32 %v690, %v696
        %v703 = vmul.f32 %v691, %v696
        %v704 = vmul.f32 %v692, %v700
        %v705 = vmul.f32 %v693, %v700
        %v706 = vadd.f32 %v660, %v702
        %v707 = vadd.f32 %v661, %v703
        %v708 = vadd.f32 %v662, %v704
        %v709 = vadd.f32 %v663, %v705
        %710 = vrot.lane.b32.xlu0 %v505, 127
        %v711 = vpop.permute.xlu0 %710
        %712 = vrot.lane.b32.xlu0 %v507, 127
        %v713 = vpop.permute.xlu0 %712
        %714 = vrot.lane.b32.xlu0 %v506, 127
        %v715 = vpop.permute.xlu0 %714
        %716 = vrot.lane.b32.xlu0 %v508, 127
        %v717 = vpop.permute.xlu0 %716
        %vm718 = vcmp.lt.s32.totalorder %v534, 127
        %v719 = vsel %vm718, %v711, %v715
        %v720 = vsel %vm718, %v713, %v717
        %v721 = vsel %vm718, %v715, %v711
        %v722 = vsel %vm718, %v717, %v713
        %s723 = scalar_lea.vmem %s1, 5
        %v724 = vld [vmem:[%s723] ss:$8 sm:$0x3]
        %v726 = vlaneseq
        %v727 = vshrl.u32 %v726, 7
        %v728 = vsub.s32 0, %v727
        %v729 = vrot.slane %v724, %v728
        %v730 = vlaneseq
        %v731 = vshrl.u32 %v730, 7
        %v732 = vsub.s32 1, %v731
        %v733 = vrot.slane %v724, %v732
        %v736 = vmul.f32 %v719, %v729
        %v737 = vmul.f32 %v721, %v733
        %v738 = vmul.f32 %v720, %v729
        %v739 = vmul.f32 %v722, %v733
        %740 = vset.pattern.permute.xlu0 5
        %741 = vperm.xlu0 %740, %v509
        %v742 = vpop.permute.xlu0 %741
        %744 = vset.pattern.permute.xlu0 5
        %745 = vperm.xlu0 %744, %v510
        %v746 = vpop.permute.xlu0 %745
        %v748 = vmul.f32 %v736, %v742
        %v749 = vmul.f32 %v737, %v742
        %v750 = vmul.f32 %v738, %v746
        %v751 = vmul.f32 %v739, %v746
        %v752 = vadd.f32 %v706, %v748
        %v753 = vadd.f32 %v707, %v749
        %v754 = vadd.f32 %v708, %v750
        %v755 = vadd.f32 %v709, %v751
        %756 = vrot.lane.b32.xlu0 %v505, 113
        %v757 = vpop.permute.xlu0 %756
        %758 = vrot.lane.b32.xlu0 %v507, 113
        %v759 = vpop.permute.xlu0 %758
        %760 = vrot.lane.b32.xlu0 %v506, 113
        %v761 = vpop.permute.xlu0 %760
        %762 = vrot.lane.b32.xlu0 %v508, 113
        %v763 = vpop.permute.xlu0 %762
        %vm764 = vcmp.lt.s32.totalorder %v534, 113
        %v765 = vsel %vm764, %v757, %v761
        %v766 = vsel %vm764, %v759, %v763
        %v767 = vsel %vm764, %v761, %v757
        %v768 = vsel %vm764, %v763, %v759
        %s769 = scalar_lea.vmem %s1, 6
        %v770 = vld [vmem:[%s769] ss:$8 sm:$0x3]
        %v772 = vlaneseq
        %v773 = vshrl.u32 %v772, 7
        %v774 = vsub.s32 0, %v773
        %v775 = vrot.slane %v770, %v774
        %v776 = vlaneseq
        %v777 = vshrl.u32 %v776, 7
        %v778 = vsub.s32 1, %v777
        %v779 = vrot.slane %v770, %v778
        %v782 = vmul.f32 %v765, %v775
        %v783 = vmul.f32 %v767, %v779
        %v784 = vmul.f32 %v766, %v775
        %v785 = vmul.f32 %v768, %v779
        %786 = vset.pattern.permute.xlu0 6
        %787 = vperm.xlu0 %786, %v509
        %v788 = vpop.permute.xlu0 %787
        %790 = vset.pattern.permute.xlu0 6
        %791 = vperm.xlu0 %790, %v510
        %v792 = vpop.permute.xlu0 %791
        %v794 = vmul.f32 %v782, %v788
        %v795 = vmul.f32 %v783, %v788
        %v796 = vmul.f32 %v784, %v792
        %v797 = vmul.f32 %v785, %v792
        %v798 = vadd.f32 %v752, %v794
        %v799 = vadd.f32 %v753, %v795
        %v800 = vadd.f32 %v754, %v796
        %v801 = vadd.f32 %v755, %v797
        %802 = vrot.lane.b32.xlu0 %v505, 112
        %v803 = vpop.permute.xlu0 %802
        %804 = vrot.lane.b32.xlu0 %v507, 112
        %v805 = vpop.permute.xlu0 %804
        %806 = vrot.lane.b32.xlu0 %v506, 112
        %v807 = vpop.permute.xlu0 %806
        %808 = vrot.lane.b32.xlu0 %v508, 112
        %v809 = vpop.permute.xlu0 %808
        %vm810 = vcmp.lt.s32.totalorder %v534, 112
        %v811 = vsel %vm810, %v803, %v807
        %v812 = vsel %vm810, %v805, %v809
        %v813 = vsel %vm810, %v807, %v803
        %v814 = vsel %vm810, %v809, %v805
        %s815 = scalar_lea.vmem %s1, 7
        %v816 = vld [vmem:[%s815] ss:$8 sm:$0x3]
        %v818 = vlaneseq
        %v819 = vshrl.u32 %v818, 7
        %v820 = vsub.s32 0, %v819
        %v821 = vrot.slane %v816, %v820
        %v822 = vlaneseq
        %v823 = vshrl.u32 %v822, 7
        %v824 = vsub.s32 1, %v823
        %v825 = vrot.slane %v816, %v824
        %v828 = vmul.f32 %v811, %v821
        %v829 = vmul.f32 %v813, %v825
        %v830 = vmul.f32 %v812, %v821
        %v831 = vmul.f32 %v814, %v825
        %832 = vset.pattern.permute.xlu0 7
        %833 = vperm.xlu0 %832, %v509
        %v834 = vpop.permute.xlu0 %833
        %836 = vset.pattern.permute.xlu0 7
        %837 = vperm.xlu0 %836, %v510
        %v838 = vpop.permute.xlu0 %837
        %v840 = vmul.f32 %v828, %v834
        %v841 = vmul.f32 %v829, %v834
        %v842 = vmul.f32 %v830, %v838
        %v843 = vmul.f32 %v831, %v838
        %v844 = vadd.f32 %v798, %v840
        %v845 = vadd.f32 %v799, %v841
        %v846 = vadd.f32 %v800, %v842
        %v847 = vadd.f32 %v801, %v843
        %848 = vrot.lane.b32.xlu0 %v505, 111
        %v849 = vpop.permute.xlu0 %848
        %850 = vrot.lane.b32.xlu0 %v507, 111
        %v851 = vpop.permute.xlu0 %850
        %852 = vrot.lane.b32.xlu0 %v506, 111
        %v853 = vpop.permute.xlu0 %852
        %854 = vrot.lane.b32.xlu0 %v508, 111
        %v855 = vpop.permute.xlu0 %854
        %vm856 = vcmp.lt.s32.totalorder %v534, 111
        %v857 = vsel %vm856, %v849, %v853
        %v858 = vsel %vm856, %v851, %v855
        %v859 = vsel %vm856, %v853, %v849
        %v860 = vsel %vm856, %v855, %v851
        %s861 = scalar_lea.vmem %s1, 16
        %v862 = vld [vmem:[%s861] ss:$8 sm:$0x3]
        %v864 = vlaneseq
        %v865 = vshrl.u32 %v864, 7
        %v866 = vsub.s32 0, %v865
        %v867 = vrot.slane %v862, %v866
        %v868 = vlaneseq
        %v869 = vshrl.u32 %v868, 7
        %v870 = vsub.s32 1, %v869
        %v871 = vrot.slane %v862, %v870
        %v874 = vmul.f32 %v857, %v867
        %v875 = vmul.f32 %v859, %v871
        %v876 = vmul.f32 %v858, %v867
        %v877 = vmul.f32 %v860, %v871
        %878 = vset.pattern.permute.xlu0 8
        %879 = vperm.xlu0 %878, %v509
        %v880 = vpop.permute.xlu0 %879
        %882 = vset.pattern.permute.xlu0 8
        %883 = vperm.xlu0 %882, %v510
        %v884 = vpop.permute.xlu0 %883
        %v886 = vmul.f32 %v874, %v880
        %v887 = vmul.f32 %v875, %v880
        %v888 = vmul.f32 %v876, %v884
        %v889 = vmul.f32 %v877, %v884
        %v890 = vadd.f32 %v844, %v886
        %v891 = vadd.f32 %v845, %v887
        %v892 = vadd.f32 %v846, %v888
        %v893 = vadd.f32 %v847, %v889
        %v894 = vld [vmem:[%s415] sm:$0xff]
        %v895 = vld [vmem:[%s415 + $0x8] sm:$0xff]
        %897 = vset.pattern.permute.xlu0 0
        %898 = vperm.xlu0 %897, %v894
        %v899 = vpop.permute.xlu0 %898
        %902 = vset.pattern.permute.xlu0 0
        %903 = vperm.xlu0 %902, %v895
        %v904 = vpop.permute.xlu0 %903
        %v906 = vadd.f32 %v890, %v899
        %v907 = vadd.f32 %v891, %v899
        %v908 = vadd.f32 %v892, %v904
        %v909 = vadd.f32 %v893, %v904
        %v910 = vmax.f32 %v906, 0.0
        %v911 = vmax.f32 %v907, 0.0
        %v912 = vmax.f32 %v908, 0.0
        %v913 = vmax.f32 %v909, 0.0
        %v914 = vmin.f32 %v910, 6.0
        %v915 = vmin.f32 %v911, 6.0
        %v916 = vmin.f32 %v912, 6.0
        %v917 = vmin.f32 %v913, 6.0
        %p918 = scmp.eq.s32.totalorder %s27, 0
        // Predicated region
        $region53: #{tpu_custom_call.1} parent=51 // pred_check
          %p919 = pneg %p918
        $region54: #{tpu_custom_call.1} parent=51 // pred_check_branch
          %921 = sbr.rel (%p919) target = $region56
        $region55: #{tpu_custom_call.1} parent=51 // pred_region
          %v922 = vld [vmem:[%s7] sm:$0xf]
          %924 = vset.pattern.permute.xlu0 0
          %925 = vperm.xlu0 %924, %v922
          %v926 = vpop.permute.xlu0 %925
          %v928 = vadd.f32 %v926, %v422
          %v929 = vadd.f32 %v926, %v426
          %v932 = vcombine.low %v928, %v929
          %934 = vst [vmem:[%s387] sm:$0xff] %v932
        $region56: #{tpu_custom_call.1} parent=51 // pred_fallthru
          _
        %v935 = vld [vmem:[%s387] sm:$0xff]
        %v936 = vld [vmem:[%s420] sm:$0x3]
        %v937 = vpack.c.bf16 %v916, %v914
        %v938 = vpack.c.bf16 %v917, %v915
        %vm939 = vcmask 130048
        %v941 = vsel %vm939, %v936, 0
        %943 = vmatprep.subr.bf16.mxu0 %v938
        %944 = vmatpush1.bf16.msra.mxu0 %v937
        %945 = vmatprep.subr.bf16.mxu0 0
        %946 = vmatpush1.bf16.msra.mxu0 0
        %947 = vmatprep.subr.bf16.mxu0 0
        %948 = vmatpush1.bf16.msra.mxu0 0
        %949 = vmatprep.subr.bf16.mxu0 0
        %950 = vmatpush1.bf16.msra.mxu0 0
        %951 = vmatprep.subr.bf16.mxu0 0
        %952 = vmatpush1.bf16.msra.mxu0 0
        %953 = vmatprep.subr.bf16.mxu0 0
        %954 = vmatpush1.bf16.msra.mxu0 0
        %955 = vmatprep.subr.bf16.mxu0 0
        %956 = vmatpush1.bf16.msra.mxu0 0
        %957 = vmatprep.subr.bf16.mxu0 0
        %958 = vmatpush1.bf16.msra.mxu0 0
        %959 = vmatprep.subr.bf16.mxu0 0
        %960 = vmatpush1.bf16.msra.mxu0 0
        %961 = vmatprep.subr.bf16.mxu0 0
        %962 = vmatpush1.bf16.msra.mxu0 0
        %963 = vmatprep.subr.bf16.mxu0 0
        %964 = vmatpush1.bf16.msra.mxu0 0
        %965 = vmatprep.subr.bf16.mxu0 0
        %966 = vmatpush1.bf16.msra.mxu0 0
        %967 = vmatprep.subr.bf16.mxu0 0
        %968 = vmatpush1.bf16.msra.mxu0 0
        %969 = vmatprep.subr.bf16.mxu0 0
        %970 = vmatpush1.bf16.msra.mxu0 0
        %971 = vmatprep.subr.bf16.mxu0 0
        %972 = vmatpush1.bf16.msra.mxu0 0
        %973 = vmatprep.subr.bf16.mxu0 0
        %974 = vmatpush1.bf16.msra.mxu0 0
        %975 = vmatprep.mubr.bf16.mxu0 0
        %976 = vmatmul.mubr.bf16.gmra.mrb[0].mxu0 %v941
        %v977 = vpop.f32.mrb[0].mxu0
        %v978 = vadd.f32 0.0, %v977
        %v979 = vpop.f32.mrb[0].mxu0
        %v980 = vadd.f32 0.0, %v979
        %v981 = vpop.f32.mrb[0].mxu0
        %v982 = vpop.f32.mrb[0].mxu0
        %983 = vdwg.mxu0
        %v986 = vcombine.low %v978, %v980
        %v988 = vadd.f32 %v935, %v986
        %989 = vst [vmem:[%s387] sm:$0xff] %v988
        %s990 = sand.u32 %s240, 1
        %s991 = scalar_lea.sflag [#allocation3], %s990
        %s992 = sand.u32 %s240, 1
        %s993 = smul.addr %s992, 8
        %s994 = scalar_lea.vmem [#allocation2], %s993
        // Predicated region
        $region57: #{tpu_custom_call.1} parent=51 // pred_check
          %p995 = pneg %p250
        $region58: #{tpu_custom_call.1} parent=51 // pred_check_branch
          %997 = sbr.rel (%p995) target = $region60
        $region59: #{tpu_custom_call.1} parent=51 // pred_region
          %s999 = ssub.s32 128, 128
          %1000 = vsyncadd %s991, %s999
          %s1001 = smul.addr %s26, 2
          %s1002 = smul.addr %s1001, 64
          %s1003 = scalar_lea.hbm %s8, %s1002
          %s1005 = sshll.u32 %s994, 4
          %s1006 = int_to_ptr.vmem [resolvable:$true] %s1005
          %1008 = dma.vmem_to_hbm [thread:$0]  %s1006, 128, %s1003, %s991
        $region60: #{tpu_custom_call.1} parent=51 // pred_fallthru
          _
      $region52: #{tpu_custom_call.1} parent=5 // pred_fallthru
        _
      %p1009 = scmp.le.s32.totalorder 2, %s17
      // Predicated region
      $region61: #{tpu_custom_call.1} parent=5 // pred_check
        %p1010 = pneg %p1009
      $region62: #{tpu_custom_call.1} parent=5 // pred_check_branch
        %1012 = sbr.rel (%p1010) target = $region64
      $region63: #{tpu_custom_call.1} parent=5 // pred_region
        %s1013 = ssub.s32 %s17, 2
        // Predicated region
        $region65: #{tpu_custom_call.1} parent=63 // pred_check
          %p1014 = pneg %p256
        $region66: #{tpu_custom_call.1} parent=63 // pred_check_branch
          %1016 = sbr.rel (%p1014) target = $region68
        $region67: #{tpu_custom_call.1} parent=63 // pred_region
          %s1017 = sand.u32 %s241, 1
          %s1018 = scalar_lea.sflag [#allocation3], %s1017
          %s1019 = sand.u32 %s241, 1
          %s1020 = smul.addr %s1019, 8
          %s1021 = scalar_lea.vmem [#allocation2], %s1020
          %1022 = dma.done %s1018, 128
        $region68: #{tpu_custom_call.1} parent=63 // pred_fallthru
          _
      $region64: #{tpu_custom_call.1} parent=5 // pred_fallthru
        _
    $region6: #{tpu_custom_call.1} parent=1 // loop_footer
      %s21 = sadd.s32 1, %s17
    $region7: #{tpu_custom_call.1} parent=1 // loop_footer_branch
      %16 = sbr.rel target = $region3
    $region8: #{tpu_custom_call.1} parent=1 // loop_exit
      _
    %1023 = vsyncpa [#allocation3], 1
    %s1024 = scalar_lea.sflag [#allocation3], 1
    %1025 = vsyncpa %s1024, 1

</llo_original>
